<compile_context>
chip_gen: v7x
topology: tpu7x:2x2x1
jax: 0.10.0
libtpu: 0.0.40
codegen_flags: <defaults>
</compile_context>

<pallas_src>
import functools

import jax
import jax.numpy as jnp
from jax.experimental import pallas as pl
from jax.experimental.pallas import tpu as pltpu


def _nll_partial_kernel(yhat_ref, y_ref, out_ref, *, n_total):
    i = pl.program_id(0)

    yhat = yhat_ref[...]                    # (TN, C) probabilities, native dtype
    y = y_ref[...]                          # (TN, C) one-hot / scores, native dtype
    tn, c = y.shape

    # Validity mask for padded rows of the ragged last tile.
    row_ids = jax.lax.broadcasted_iota(jnp.int32, (tn, 1), 0)          # (TN, 1)
    valid = (i * tn + row_ids) < n_total                               # (TN, 1)

    # argmax over classes (dim=1), first-occurrence tie-break (torch.argmax).
    row_max = jnp.max(y, axis=1, keepdims=True)                        # (TN, 1)
    col_ids = jax.lax.broadcasted_iota(jnp.int32, (tn, c), 1)          # (TN, C)
    arg = jnp.min(jnp.where(y == row_max, col_ids, jnp.int32(c)),
                  axis=1, keepdims=True)                               # (TN, 1)

    # Pick the probability at the argmax in the native dtype, THEN upcast only
    # the picked (TN, 1) column and take its log (TN logs instead of TN*C).
    pick_mask = col_ids == arg                                         # (TN, C)
    picked_p = jnp.sum(jnp.where(pick_mask, yhat, 0.0),
                       axis=1, keepdims=True).astype(jnp.float32)      # (TN, 1)
    # Padded / garbage rows -> log(1) = 0, contributing nothing to the sum.
    picked_p = jnp.where(valid, picked_p, 1.0)
    partial = jnp.sum(jnp.log(picked_p))                               # scalar f32

    # Single broadcast store; the wrapper reads element [0, 0] of each tile.
    out_ref[...] = jnp.full((1, 8, 128), partial, dtype=jnp.float32)


def _choose_tile_rows(n, c, yhat_itemsize, y_itemsize):
    """Pick TN from bytes, not a fixed row cap."""
    # Sublane-packing granularity of the narrower input dtype:
    # 32-bit -> 8 rows, 16-bit -> 16 rows, 8-bit -> 32 rows.
    row_mult = max(8, 32 // max(1, min(yhat_itemsize, y_itemsize)))

    # ~8 MiB of combined (y_hat + y) rows per grid step; double-buffered
    # pipeline footprint ~16 MiB (< 32 MiB scoped VMEM on v5e / v6e / v7x).
    bytes_per_row = max(1, c * (yhat_itemsize + y_itemsize))
    tn = (8 * 1024 * 1024) // bytes_per_row
    tn = max(row_mult, (int(tn) // row_mult) * row_mult)

    # Keep >= 2 grid steps whenever the batch allows it (v7x megacore).
    half_rows = -(-n // 2)                                   # ceil(n / 2)
    half_rows = -(-half_rows // row_mult) * row_mult         # round up
    return min(tn, max(row_mult, half_rows))


def categorical_cross_entropy_loss(y_hat, y):
    """Pallas equivalent of F.nll_loss(y_hat.log(), y.argmax(dim=1)) (mean)."""
    assert y_hat.shape == y.shape and y_hat.ndim == 2
    n, c = y_hat.shape

    yh_item = jnp.dtype(y_hat.dtype).itemsize
    y_item = jnp.dtype(y.dtype).itemsize
    tn = _choose_tile_rows(n, c, yh_item, y_item)
    num_tiles = pl.cdiv(n, tn)

    # Scoped VMEM: room for the double-buffered input pipeline + headroom,
    # capped at 48 MiB so it also fits v7x's 64 MiB per-TC VMEM.
    tile_bytes = tn * c * (yh_item + y_item)
    vmem_limit = int(max(32 * 1024 * 1024,
                         min(48 * 1024 * 1024, 2 * tile_bytes + (2 << 20))))

    kernel = functools.partial(_nll_partial_kernel, n_total=n)

    partials = pl.pallas_call(
        kernel,
        out_shape=jax.ShapeDtypeStruct((num_tiles, 8, 128), jnp.float32),
        grid=(num_tiles,),
        in_specs=[
            pl.BlockSpec((tn, c), lambda i: (i, 0)),
            pl.BlockSpec((tn, c), lambda i: (i, 0)),
        ],
        out_specs=pl.BlockSpec((1, 8, 128), lambda i: (i, 0, 0)),
        compiler_params=pltpu.CompilerParams(
            dimension_semantics=("parallel",),
            vmem_limit_bytes=vmem_limit,
        ),
    )(y_hat, y)

    # Tiny final reduction + nll_loss reduction='mean' (divide by the true N).
    return -jnp.sum(partials[:, 0, 0]) / jnp.float32(n)


if __name__ == "__main__":
    key = jax.random.PRNGKey(0)
    k1, k2 = jax.random.split(key)

    N, C = 8, 16
    # y_hat: valid probability rows (positive, sum to 1), as expected by .log()
    logits = jax.random.normal(k1, (N, C), dtype=jnp.float32)
    y_hat = jax.nn.softmax(logits, axis=1)
    # y: one-hot targets
    labels = jax.random.randint(k2, (N,), 0, C)
    y = jax.nn.one_hot(labels, C, dtype=jnp.float32)

    loss = categorical_cross_entropy_loss(y_hat, y)
    jax.block_until_ready(loss)

    # reference check in plain JAX
    ref = -jnp.mean(jnp.log(y_hat)[jnp.arange(N), jnp.argmax(y, axis=1)])
    assert jnp.allclose(loss, ref, atol=1e-6, rtol=1e-6), (loss, ref)

    print("KERNEL_OK")
</pallas_src>

<mosaic_0001>
module attributes {stable_mosaic.version = 11 : i64} {
  func.func @_nll_partial_kernel(%arg0: i32, %arg1: memref<8x16xf32, #tpu.memory_space<vmem>>, %arg2: memref<8x16xf32, #tpu.memory_space<vmem>>, %arg3: memref<1x8x128xf32, #tpu.memory_space<vmem>>) attributes {dimension_semantics = [#tpu.dimension_semantics<parallel>], iteration_bounds = array<i64: 1>, scalar_prefetch = 0 : i64, scratch_operands = 0 : i64, tpu.core_type = #tpu.core_type<tc>, window_params = [{transform_indices = @transform_0, window_bounds = array<i64: 8, 16>}, {transform_indices = @transform_1, window_bounds = array<i64: 8, 16>}, {transform_indices = @transform_2, window_bounds = array<i64: 1, 8, 128>}]} {
    %c0 = arith.constant 0 : index
    %c0_0 = arith.constant 0 : index
    %0 = vector.load %arg1[%c0, %c0_0] : memref<8x16xf32, #tpu.memory_space<vmem>>, vector<8x16xf32>
    %c0_1 = arith.constant 0 : index
    %c0_2 = arith.constant 0 : index
    %1 = vector.load %arg2[%c0_1, %c0_2] : memref<8x16xf32, #tpu.memory_space<vmem>>, vector<8x16xf32>
    %2 = tpu.iota {dimensions = array<i32: 0>} : vector<8x1xi32>
    %c8_i32 = arith.constant 8 : i32
    %3 = arith.muli %arg0, %c8_i32 : i32
    %4 = vector.broadcast %3 : i32 to vector<8x1xi32>
    %5 = arith.addi %4, %2 : vector<8x1xi32>
    %c8_i32_3 = arith.constant 8 : i32
    %6 = vector.broadcast %c8_i32_3 : i32 to vector<8x1xi32>
    %7 = arith.cmpi slt, %5, %6 : vector<8x1xi32>
    %cst = arith.constant dense<0xFF800000> : vector<8xf32>
    %8 = vector.multi_reduction <maximumf>, %1, %cst [1] : vector<8x16xf32> to vector<8xf32>
    %9 = vector.shape_cast %8 : vector<8xf32> to vector<8x1xf32>
    %10 = tpu.iota {dimensions = array<i32: 1>} : vector<8x16xi32>
    %11 = vector.broadcast %9 : vector<8x1xf32> to vector<8x16xf32>
    %12 = arith.cmpf oeq, %1, %11 : vector<8x16xf32>
    %c16_i32 = arith.constant 16 : i32
    %13 = vector.broadcast %c16_i32 : i32 to vector<8x16xi32>
    %14 = arith.select %12, %10, %13 : vector<8x16xi1>, vector<8x16xi32>
    %cst_4 = arith.constant dense<2147483647> : vector<8xi32>
    %15 = vector.multi_reduction <minsi>, %14, %cst_4 [1] : vector<8x16xi32> to vector<8xi32>
    %16 = vector.shape_cast %15 : vector<8xi32> to vector<8x1xi32>
    %17 = vector.broadcast %16 : vector<8x1xi32> to vector<8x16xi32>
    %18 = arith.cmpi eq, %10, %17 : vector<8x16xi32>
    %cst_5 = arith.constant 0.000000e+00 : f32
    %19 = vector.broadcast %cst_5 : f32 to vector<8x16xf32>
    %20 = arith.select %18, %0, %19 : vector<8x16xi1>, vector<8x16xf32>
    %cst_6 = arith.constant dense<0.000000e+00> : vector<8xf32>
    %21 = vector.multi_reduction <add>, %20, %cst_6 [1] : vector<8x16xf32> to vector<8xf32>
    %22 = vector.shape_cast %21 : vector<8xf32> to vector<8x1xf32>
    %cst_7 = arith.constant 1.000000e+00 : f32
    %23 = vector.broadcast %cst_7 : f32 to vector<8x1xf32>
    %24 = arith.select %7, %22, %23 : vector<8x1xi1>, vector<8x1xf32>
    %25 = math.log %24 : vector<8x1xf32>
    %26 = vector.shape_cast %25 : vector<8x1xf32> to vector<1x8x1xf32>
    %cst_8 = arith.constant dense<0.000000e+00> : vector<1xf32>
    %27 = vector.multi_reduction <add>, %26, %cst_8 [1, 2] : vector<1x8x1xf32> to vector<1xf32>
    %28 = vector.shape_cast %27 : vector<1xf32> to vector<1x1x1xf32>
    %29 = vector.extract %28[0, 0, 0] : f32 from vector<1x1x1xf32>
    %30 = vector.broadcast %29 : f32 to vector<1x8x128xf32>
    %c0_9 = arith.constant 0 : index
    %c0_10 = arith.constant 0 : index
    %c0_11 = arith.constant 0 : index
    %31 = vector.load %arg3[%c0_9, %c0_10, %c0_11] : memref<1x8x128xf32, #tpu.memory_space<vmem>>, vector<1x8x128xf32>
    tpu.vector_store %arg3[%c0_9, %c0_10, %c0_11], %30 {strides = array<i32>} : memref<1x8x128xf32, #tpu.memory_space<vmem>>, vector<1x8x128xf32>,
    return
  }
  func.func @transform_0(%arg0: i32) -> (i32, i32) {
    %c0_i32 = arith.constant 0 : i32
    %c0_i32_0 = arith.constant 0 : i32
    return %arg0, %c0_i32 : i32, i32
  }
  func.func @transform_1(%arg0: i32) -> (i32, i32) {
    %c0_i32 = arith.constant 0 : i32
    %c0_i32_0 = arith.constant 0 : i32
    return %arg0, %c0_i32 : i32, i32
  }
  func.func @transform_2(%arg0: i32) -> (i32, i32, i32) {
    %c0_i32 = arith.constant 0 : i32
    %c0_i32_0 = arith.constant 0 : i32
    %c0_i32_1 = arith.constant 0 : i32
    return %arg0, %c0_i32, %c0_i32_0 : i32, i32, i32
  }
}

</mosaic_0001>

<llo_original>
// kernel: tpu_custom_call.1
$region0: #{tpu_custom_call.1}
  #allocation0 [shape = 'u32[]', space=smem, size = 0x4, offset = 0x4, fixed_abs, tag = 'smem constant byte address 0x4 - core index']
  #allocation1 [shape = 'u32[144,128]{1,0:T(1,128)}', space=vmem, size = 0x12000, scoped, tag = 'internal scratch']
  %s0 = inlined_call_operand.hbm [shape: f32[8,16], index: 0, kind: input, shape index: {}]
  %s1 = inlined_call_operand.hbm [shape: f32[8,16], index: 1, kind: input, shape index: {}]
  %s2 = inlined_call_operand.hbm [shape: f32[1,8,128], index: 2, kind: output, shape index: {}]
  %s3 = sld [smem:[#allocation0]]
  $region26: #{tpu_custom_call.1} parent=0
    _
  %s5 = ssub.s32 1, %s3
  %s6 = scalar_select 0, %s5, %s3
  $region1: #{tpu_custom_call.1} parent=0
    #allocation2 [shape = 'u8[4096]{0}', space=vmem, size = 0x1000, scoped, tag = 'input window, operand 0, single buffered']
    #allocation3 [shape = 's32[1]{0}', space=sflag, size = 0x4, scoped, tag = 'scoped memory for tpu_custom_call.1']
    #allocation4 [shape = 's32[1]{0}', space=sflag, size = 0x4, scoped, tag = 'scoped memory for tpu_custom_call.1']
    #allocation5 [shape = 'u8[4096]{0}', space=vmem, size = 0x1000, scoped, tag = 'input window, operand 1, single buffered']
    #allocation6 [shape = 's32[1]{0}', space=sflag, size = 0x4, scoped, tag = 'scoped memory for tpu_custom_call.1']
    #allocation7 [shape = 'u8[4096]{0}', space=vmem, size = 0x1000, scoped, tag = 'output window, operand 0, single buffered']
    %7 = vsyncpa [#allocation3], 0
    %8 = vsyncpa [#allocation6], 0
    %9 = vsyncpa [#allocation4], 0
    // Predicated region
    $region2: #{tpu_custom_call.1} parent=1 // pred_check
      _
    $region3: #{tpu_custom_call.1} parent=1 // pred_check_branch
      %11 = sbr.rel (0) target = $region5
    $region4: #{tpu_custom_call.1} parent=1 // pred_region
      %s13 = ssub.s32 128, 128
      %14 = vsyncadd [#allocation3], %s13
      %s16 = sshll.u32 [#allocation2], 4
      %s17 = int_to_ptr.vmem [resolvable:$true] %s16
      %19 = dma.hbm_to_vmem [thread:$0]  %s0, 128, %s17, [#allocation3]
    $region5: #{tpu_custom_call.1} parent=1 // pred_fallthru
      _
    // Predicated region
    $region6: #{tpu_custom_call.1} parent=1 // pred_check
      _
    $region7: #{tpu_custom_call.1} parent=1 // pred_check_branch
      %21 = sbr.rel (0) target = $region9
    $region8: #{tpu_custom_call.1} parent=1 // pred_region
      %s23 = ssub.s32 128, 128
      %24 = vsyncadd [#allocation6], %s23
      %s26 = sshll.u32 [#allocation5], 4
      %s27 = int_to_ptr.vmem [resolvable:$true] %s26
      %29 = dma.hbm_to_vmem [thread:$0]  %s1, 128, %s27, [#allocation6]
    $region9: #{tpu_custom_call.1} parent=1 // pred_fallthru
      _
    // Predicated region
    $region10: #{tpu_custom_call.1} parent=1 // pred_check
      _
    $region11: #{tpu_custom_call.1} parent=1 // pred_check_branch
      %31 = sbr.rel (0) target = $region13
    $region12: #{tpu_custom_call.1} parent=1 // pred_region
      %32 = dma.done [#allocation3], 128
    $region13: #{tpu_custom_call.1} parent=1 // pred_fallthru
      _
    // Predicated region
    $region14: #{tpu_custom_call.1} parent=1 // pred_check
      _
    $region15: #{tpu_custom_call.1} parent=1 // pred_check_branch
      %34 = sbr.rel (0) target = $region17
    $region16: #{tpu_custom_call.1} parent=1 // pred_region
      %35 = dma.done [#allocation6], 128
    $region17: #{tpu_custom_call.1} parent=1 // pred_fallthru
      _
    %v36 = vld [vmem:[#allocation2] sm:$0xff]
    %v37 = vld [vmem:[#allocation5] sm:$0xff]
    %v38 = vlaneseq
    %v39 = vshrl.u32 %v38, 7
    %s40 = smul.u32 0, 8
    %v41 = vstv %s40
    %v42 = vadd.s32 %v41, %v39
    %vm43 = vcmp.lt.s32.totalorder %v42, 8
    %vm44 = vcmask 130048
    %v45 = vsel %vm44, %v37, -inf
    %46 = vmax.xlane.f32.xlu0 %v45
    %v47 = vpop.xlane.xlu0 %46
    %v48 = vlaneseq
    %v49 = vand.u32 %v48, 127
    %vm50 = vcmp.eq.f32.partialorder %v37, %v47
    %v51 = vsel %vm50, %v49, 16
    %v52 = vsel %vm44, %v51, 2147483647
    %v53 = vand.u32 %v52, 65535
    %v54 = vshra.s32 %v52, 16
    %v55 = vcvt.s32.f32 %v53
    %v56 = vcvt.s32.f32 %v54
    %57 = vmin.xlane.f32.xlu0 %v56
    %v58 = vpop.xlane.xlu0 %57
    %vm59 = vcmp.eq.f32.partialorder %v56, %v58
    %v60 = vsel %vm59, %v55, inf
    %61 = vmin.xlane.f32.xlu0 %v60
    %v62 = vpop.xlane.xlu0 %61
    %v63 = vcvt.f32.s32 %v62
    %v64 = vcvt.f32.s32 %v58
    %v65 = vshll.u32 %v64, 16
    %v66 = vadd.s32 %v65, %v63
    %vm67 = vcmp.eq.s32.totalorder %v49, %v66
    %v68 = vsel %vm67, %v36, 0.0
    %v69 = vsel %vm44, %v68, 0.0
    %70 = vadd.xlane.f32.xlu0 %v69
    %v71 = vpop.xlane.xlu0 %70
    %v72 = vsel %vm43, %v71, 1.0
    %v73 = vlog2.pop %v72
    %v74 = vmul.f32 %v73, 0.6931472
    %vm75 = vcmask 7168
    %v76 = vsel %vm75, %v74, 0.0
    %77 = vadd.xlane.f32.xlu0 %v76
    %v78 = vpop.xlane.xlu0 %77
    %v79 = vrot.slane %v78, 4
    %v80 = vadd.f32 %v78, %v79
    %v81 = vrot.slane %v80, 2
    %v82 = vadd.f32 %v80, %v81
    %v83 = vrot.slane %v82, 1
    %v84 = vadd.f32 %v82, %v83
    %s85 = vtos %v84
    %v86 = vstv %s85
    %87 = vst [vmem:[#allocation7] sm:$0xff] %v86
    // Predicated region
    $region18: #{tpu_custom_call.1} parent=1 // pred_check
      _
    $region19: #{tpu_custom_call.1} parent=1 // pred_check_branch
      %89 = sbr.rel (0) target = $region21
    $region20: #{tpu_custom_call.1} parent=1 // pred_region
      %s91 = ssub.s32 128, 128
      %92 = vsyncadd [#allocation4], %s91
      %s94 = sshll.u32 [#allocation7], 4
      %s95 = int_to_ptr.vmem [resolvable:$true] %s94
      %97 = dma.vmem_to_hbm [thread:$0]  %s95, 128, %s2, [#allocation4]
    $region21: #{tpu_custom_call.1} parent=1 // pred_fallthru
      _
    // Predicated region
    $region22: #{tpu_custom_call.1} parent=1 // pred_check
      _
    $region23: #{tpu_custom_call.1} parent=1 // pred_check_branch
      %99 = sbr.rel (0) target = $region25
    $region24: #{tpu_custom_call.1} parent=1 // pred_region
      %100 = dma.done [#allocation4], 128
    $region25: #{tpu_custom_call.1} parent=1 // pred_fallthru
      _
    %101 = vsyncpa [#allocation3], 1
    %102 = vsyncpa [#allocation6], 1
    %103 = vsyncpa [#allocation4], 1

</llo_original>
